<compile_context>
chip_gen: v5e
topology: v5e:2x2
jax: 0.10.0
libtpu: 0.0.40
codegen_flags: <defaults>
</compile_context>

<pallas_src>
import functools

import jax
import jax.numpy as jnp
from jax import lax
from jax.experimental import pallas as pl
from jax.experimental.pallas import tpu as pltpu


def _round_up(n, m):
    return ((n + m - 1) // m) * m


def _choose_tile(B, tm_max):
    """Row-tile size.

    Cap at the batch size (rounded to the 16-row packing unit) and, when the whole batch
    would otherwise fit in a single tile, split it into >= 2 tiles so that on v7x both
    TensorCores get work under dimension_semantics=("parallel",). The extra grid step is
    ~0.35 us on single-TC chips (v5e/v6e) — negligible for a streaming kernel.
    """
    tile = min(tm_max, _round_up(B, 16))
    if B <= tile and B > 16:
        tile = min(tile, _round_up(pl.cdiv(B, 2), 16))
    return max(tile, 16)


def item_tower_kernel(x_ref, wt_ref, b_ref, o_ref):
    # x_ref: (tm, d_in) f32, wt_ref: (d_in, d_out) bf16 (or f32), b_ref: (1, d_out) f32,
    # o_ref: (tm, d_out). Cast operands to bf16 in-kernel (no extra HBM pass), MXU matmul
    # with f32 accumulation, f32 epilogue.
    x = x_ref[...].astype(jnp.bfloat16)
    w = wt_ref[...].astype(jnp.bfloat16)
    y = jnp.dot(x, w, preferred_element_type=jnp.float32)
    y = y + b_ref[...]
    # L2 normalize along the last dim; clamp matches torch.nn.functional.normalize
    # (eps=1e-12 on the norm == 1e-24 on the squared norm). rsqrt -> EUP, mul -> VPU.
    # NOTE: must stay strictly per-row — tail-block OOB rows hold undefined data and are
    # only isolated because nothing reduces across rows; their writes are masked.
    sq = jnp.sum(y * y, axis=-1, keepdims=True)
    inv = lax.rsqrt(jnp.maximum(sq, 1e-24))
    o_ref[...] = (y * inv).astype(o_ref.dtype)


@functools.partial(jax.jit, static_argnames=("tm", "out_dtype"))
def item_tower_forward(x, wt, b, *, tm=512, out_dtype=None):
    """ItemTower forward: L2-normalize(x @ wt + b) along the last dim.

    x:  (B, d_in)      activations (f32; cast to bf16 inside the kernel)
    wt: (d_in, d_out)  projection weight stored PRE-TRANSPOSED and ideally in bf16
                       (torch Linear weight is (d_out, d_in); transpose/cast once at
                        parameter-setup time, never per call)
    b:  (d_out,)       bias (f32)
    out_dtype:         defaults to x.dtype (f32); pass jnp.bfloat16 to halve the output
                       HBM stream when the downstream consumer tolerates it.
    """
    B, d_in = x.shape
    d_in_w, d_out = wt.shape
    assert d_in == d_in_w, "x / weight inner-dim mismatch"
    assert b.shape == (d_out,)

    out_dtype = x.dtype if out_dtype is None else jnp.dtype(out_dtype)

    tm_eff = _choose_tile(B, tm)
    grid_m = pl.cdiv(B, tm_eff)

    b2 = b.reshape(1, d_out).astype(jnp.float32)

    cost = pl.CostEstimate(
        flops=2 * B * d_in * d_out,
        transcendentals=B,  # one rsqrt per row
        bytes_accessed=(x.size * x.dtype.itemsize
                        + wt.size * wt.dtype.itemsize
                        + b2.size * 4
                        + B * d_out * jnp.dtype(out_dtype).itemsize),
    )

    return pl.pallas_call(
        item_tower_kernel,
        out_shape=jax.ShapeDtypeStruct((B, d_out), out_dtype),
        grid_spec=pltpu.PrefetchScalarGridSpec(
            num_scalar_prefetch=0,
            grid=(grid_m,),
            in_specs=[
                pl.BlockSpec((tm_eff, d_in), lambda i: (i, 0)),   # x row tile (streamed)
                pl.BlockSpec((d_in, d_out), lambda i: (0, 0)),    # resident weight
                pl.BlockSpec((1, d_out), lambda i: (0, 0)),       # resident bias
            ],
            out_specs=pl.BlockSpec((tm_eff, d_out), lambda i: (i, 0)),
        ),
        compiler_params=pltpu.CompilerParams(
            dimension_semantics=("parallel",),
        ),
        cost_estimate=cost,
    )(x, wt, b2)


def reference_forward(x, w, b):
    y = x @ w.T + b
    norm = jnp.maximum(jnp.linalg.norm(y, axis=-1, keepdims=True), 1e-12)
    return y / norm


if __name__ == "__main__":
    d = 384       # ItemTower default hidden size
    B = 37        # deliberately NOT a multiple of the tile to exercise the masked tail

    key = jax.random.PRNGKey(0)
    kx, kw, kb = jax.random.split(key, 3)

    # Deterministic init mimicking nn.Linear: U(-1/sqrt(d), 1/sqrt(d))
    bound = 1.0 / jnp.sqrt(jnp.float32(d))
    w = jax.random.uniform(kw, (d, d), jnp.float32, minval=-bound, maxval=bound)  # (d_out, d_in)
    b = jax.random.uniform(kb, (d,), jnp.float32, minval=-bound, maxval=bound)
    x = jax.random.normal(kx, (B, d), jnp.float32)

    # Parameter setup done ONCE, outside the hot path: pre-transposed + bf16 weight.
    wt = jnp.asarray(w.T, dtype=jnp.bfloat16)   # (d_in, d_out)

    out = item_tower_forward(x, wt, b)
    out = jax.block_until_ready(out)

    ref = reference_forward(x, w, b)
    assert out.shape == (B, d)
    # bf16 matmul (f32 accumulation) vs f32 reference: agreement to ~1e-3 on unit-norm rows.
    assert jnp.allclose(out, ref, atol=5e-3, rtol=5e-3), "mismatch vs reference"
    assert jnp.allclose(jnp.linalg.norm(out, axis=-1), 1.0, atol=1e-3), "rows not unit-norm"

    print("KERNEL_OK")
</pallas_src>

<mosaic_0001>
module attributes {stable_mosaic.version = 11 : i64} {
  func.func @item_tower_kernel(%arg0: i32, %arg1: memref<32x384xf32, #tpu.memory_space<vmem>>, %arg2: memref<384x384xbf16, #tpu.memory_space<vmem>>, %arg3: memref<1x384xf32, #tpu.memory_space<vmem>>, %arg4: memref<32x384xf32, #tpu.memory_space<vmem>>) attributes {dimension_semantics = [#tpu.dimension_semantics<parallel>], iteration_bounds = array<i64: 2>, scalar_prefetch = 0 : i64, scratch_operands = 0 : i64, tpu.core_type = #tpu.core_type<tc>, window_params = [{transform_indices = @transform_0, window_bounds = array<i64: 32, 384>}, {pipeline_mode = #tpu.pipeline_mode<synchronous>, transform_indices = @transform_1, window_bounds = array<i64: 384, 384>}, {pipeline_mode = #tpu.pipeline_mode<synchronous>, transform_indices = @transform_2, window_bounds = array<i64: 1, 384>}, {transform_indices = @transform_3, window_bounds = array<i64: 32, 384>}]} {
    %c0 = arith.constant 0 : index
    %c0_0 = arith.constant 0 : index
    %0 = vector.load %arg1[%c0, %c0_0] : memref<32x384xf32, #tpu.memory_space<vmem>>, vector<32x384xf32>
    %1 = arith.truncf %0 : vector<32x384xf32> to vector<32x384xbf16>
    %c0_1 = arith.constant 0 : index
    %c0_2 = arith.constant 0 : index
    %2 = vector.load %arg2[%c0_1, %c0_2] : memref<384x384xbf16, #tpu.memory_space<vmem>>, vector<384x384xbf16>
    %cst = arith.constant dense<0.000000e+00> : vector<32x384xf32>
    %3 = tpu.matmul %1, %2, %cst {dimension_numbers = #tpu.dot_dimension_numbers<[1], [0], [0], [1], [0, 0, 1, 1], [], []>} : vector<32x384xbf16>, vector<384x384xbf16>, vector<32x384xf32> -> vector<32x384xf32>
    %c0_3 = arith.constant 0 : index
    %c0_4 = arith.constant 0 : index
    %4 = vector.load %arg3[%c0_3, %c0_4] : memref<1x384xf32, #tpu.memory_space<vmem>>, vector<1x384xf32>
    %5 = vector.broadcast %4 : vector<1x384xf32> to vector<32x384xf32>
    %6 = arith.addf %3, %5 : vector<32x384xf32>
    %7 = arith.mulf %6, %6 : vector<32x384xf32>
    %cst_5 = arith.constant dense<0.000000e+00> : vector<32xf32>
    %8 = vector.multi_reduction <add>, %7, %cst_5 [1] : vector<32x384xf32> to vector<32xf32>
    %9 = vector.shape_cast %8 : vector<32xf32> to vector<32x1xf32>
    %cst_6 = arith.constant 1.000000e-24 : f32
    %10 = vector.broadcast %cst_6 : f32 to vector<32x1xf32>
    %11 = arith.maximumf %9, %10 : vector<32x1xf32>
    %12 = math.rsqrt %11 : vector<32x1xf32>
    %13 = vector.broadcast %12 : vector<32x1xf32> to vector<32x384xf32>
    %14 = arith.mulf %6, %13 : vector<32x384xf32>
    %c0_7 = arith.constant 0 : index
    %c0_8 = arith.constant 0 : index
    %15 = vector.load %arg4[%c0_7, %c0_8] : memref<32x384xf32, #tpu.memory_space<vmem>>, vector<32x384xf32>
    tpu.vector_store %arg4[%c0_7, %c0_8], %14 {strides = array<i32>} : memref<32x384xf32, #tpu.memory_space<vmem>>, vector<32x384xf32>,
    return
  }
  func.func @transform_0(%arg0: i32) -> (i32, i32) {
    %c0_i32 = arith.constant 0 : i32
    %c0_i32_0 = arith.constant 0 : i32
    return %arg0, %c0_i32 : i32, i32
  }
  func.func @transform_1(%arg0: i32) -> (i32, i32) {
    %c0_i32 = arith.constant 0 : i32
    %c0_i32_0 = arith.constant 0 : i32
    %c0_i32_1 = arith.constant 0 : i32
    return %c0_i32, %c0_i32_0 : i32, i32
  }
  func.func @transform_2(%arg0: i32) -> (i32, i32) {
    %c0_i32 = arith.constant 0 : i32
    %c0_i32_0 = arith.constant 0 : i32
    %c0_i32_1 = arith.constant 0 : i32
    return %c0_i32, %c0_i32_0 : i32, i32
  }
  func.func @transform_3(%arg0: i32) -> (i32, i32) {
    %c0_i32 = arith.constant 0 : i32
    %c0_i32_0 = arith.constant 0 : i32
    return %arg0, %c0_i32 : i32, i32
  }
}

</mosaic_0001>

<llo_original>
// kernel: item_tower_forward.1
$region0: #{item_tower_forward.1}
  #allocation0 [shape = 'u32[]', space=smem, size = 0x4, offset = 0x4, fixed_abs, tag = 'smem constant byte address 0x4 - core index']
  #allocation1 [shape = 'u32[72,128]{1,0:T(1,128)}', space=vmem, size = 0x9000, scoped, tag = 'internal scratch']
  %s0 = inlined_call_operand.hbm [shape: f32[37,384], index: 0, kind: input, shape index: {}]
  %s1 = inlined_call_operand.hbm [shape: bf16[384,384], index: 1, kind: input, shape index: {}]
  %s2 = inlined_call_operand.vmem [shape: f32[1,384], index: 2, kind: input, shape index: {}]
  %s3 = inlined_call_operand.hbm [shape: f32[37,384], index: 3, kind: output, shape index: {}]
  %s4 = sld [smem:[#allocation0]]
  $region53: #{item_tower_forward.1} parent=0
    _
  %s6 = ssub.s32 1, %s4
  %s7 = scalar_select 0, %s6, %s4
  $region1: #{item_tower_forward.1} parent=0
    #allocation2 [shape = 'u8[98304]{0}', space=vmem, size = 0x18000, scoped, tag = 'input window, operand 0']
    #allocation3 [shape = 's32[2]{0}', space=sflag, size = 0x8, scoped, tag = 'scoped memory for item_tower_forward.1']
    #allocation4 [shape = 's32[2]{0}', space=sflag, size = 0x8, scoped, tag = 'scoped memory for item_tower_forward.1']
    #allocation5 [shape = 'u8[294912]{0}', space=vmem, size = 0x48000, scoped, tag = 'input window, operand 1, single buffered']
    #allocation6 [shape = 's32[1]{0}', space=sflag, size = 0x4, scoped, tag = 'scoped memory for item_tower_forward.1']
    #allocation7 [shape = 'u8[98304]{0}', space=vmem, size = 0x18000, scoped, tag = 'output window, operand 0']
    %8 = vsyncpa [#allocation3], 0
    %s9 = scalar_lea.sflag [#allocation3], 1
    %10 = vsyncpa %s9, 0
    %11 = vsyncpa [#allocation6], 0
    %12 = vsyncpa [#allocation4], 0
    %s13 = scalar_lea.sflag [#allocation4], 1
    %14 = vsyncpa %s13, 0
    loop: start=0, step=1, limit=4
    $region2: #{item_tower_forward.1} parent=1 // loop_pre_header
      _
    $region3: #{item_tower_forward.1} parent=1 // loop_header
      %s16 = sphi 0, %s20
      %p17 = scmp.ge.s32.totalorder %s16, 4
      %s26 = sphi 0, %s28
      %s29 = sphi 0, %s26
      %s30 = sphi 0, %s29
      %s46 = sphi 0, %s30
      %s50 = sphi 0, %s50
      %s52 = sphi 0, %s50
      %s53 = sphi 0, %s52
      %s67 = sphi 0, %s53
      %s71 = sphi 0, %s71
      %s73 = sphi 0, %s71
      %s74 = sphi 0, %s73
      %s88 = sphi 0, %s74
      %s94 = sphi 0, %s96
      %s97 = sphi 0, %s94
      %s98 = sphi 0, %s97
      %s114 = sphi 0, %s98
    $region4: #{item_tower_forward.1} parent=1 // loop_header_branch
      %19 = sbr.rel (%p17) target = $region8
    $region5: #{item_tower_forward.1} parent=1 // loop_body
      %s21 = ssub.s32 %s16, 1
      %s22 = ssub.s32 %s16, 2
      %s23 = sadd.s32 %s16, 1
      %s24 = ssub.s32 %s16, %s23
      %p25 = scmp.eq.s32.totalorder %s24, 0
      %s27 = sadd.s32 %s26, 1
      %s28 = scalar_select %p25, %s26, %s27
      %p31 = pneg %p25
      %p32 = scmp.eq.s32.totalorder %s16, 1
      %p33 = por %p31, %p32
      %p34 = scmp.ne.s32.totalorder %s26, %s29
      %p35 = scmp.eq.s32.totalorder %s16, 0
      %p36 = por %p34, %p35
      %p37 = scmp.ne.s32.totalorder %s26, %s29
      %p38 = scmp.eq.s32.totalorder %s21, 1
      %p39 = por %p37, %p38
      %p40 = scmp.ne.s32.totalorder %s29, %s30
      %p41 = scmp.eq.s32.totalorder %s21, 0
      %p42 = por %p40, %p41
      %p43 = scmp.ne.s32.totalorder %s29, %s30
      %p44 = scmp.eq.s32.totalorder %s22, 1
      %p45 = por %p43, %p44
      %p47 = scmp.ne.s32.totalorder %s30, %s46
      %p48 = scmp.eq.s32.totalorder %s22, 0
      %p49 = por %p47, %p48
      %s51 = sadd.s32 %s50, 1
      %p54 = scmp.eq.s32.totalorder %s16, 1
      %p55 = scmp.ne.s32.totalorder %s50, %s52
      %p56 = scmp.eq.s32.totalorder %s16, 0
      %p57 = por %p55, %p56
      %p58 = scmp.ne.s32.totalorder %s50, %s52
      %p59 = scmp.eq.s32.totalorder %s21, 1
      %p60 = por %p58, %p59
      %p61 = scmp.ne.s32.totalorder %s52, %s53
      %p62 = scmp.eq.s32.totalorder %s21, 0
      %p63 = por %p61, %p62
      %p64 = scmp.ne.s32.totalorder %s52, %s53
      %p65 = scmp.eq.s32.totalorder %s22, 1
      %p66 = por %p64, %p65
      %p68 = scmp.ne.s32.totalorder %s53, %s67
      %p69 = scmp.eq.s32.totalorder %s22, 0
      %p70 = por %p68, %p69
      %s72 = sadd.s32 %s71, 1
      %p75 = scmp.eq.s32.totalorder %s16, 1
      %p76 = scmp.ne.s32.totalorder %s71, %s73
      %p77 = scmp.eq.s32.totalorder %s16, 0
      %p78 = por %p76, %p77
      %p79 = scmp.ne.s32.totalorder %s71, %s73
      %p80 = scmp.eq.s32.totalorder %s21, 1
      %p81 = por %p79, %p80
      %p82 = scmp.ne.s32.totalorder %s73, %s74
      %p83 = scmp.eq.s32.totalorder %s21, 0
      %p84 = por %p82, %p83
      %p85 = scmp.ne.s32.totalorder %s73, %s74
      %p86 = scmp.eq.s32.totalorder %s22, 1
      %p87 = por %p85, %p86
      %p89 = scmp.ne.s32.totalorder %s74, %s88
      %p90 = scmp.eq.s32.totalorder %s22, 0
      %p91 = por %p89, %p90
      %s92 = ssub.s32 %s16, %s23
      %p93 = scmp.eq.s32.totalorder %s92, 0
      %s95 = sadd.s32 %s94, 1
      %s96 = scalar_select %p93, %s94, %s95
      %p99 = pneg %p93
      %p100 = scmp.eq.s32.totalorder %s16, 1
      %p101 = por %p99, %p100
      %p102 = scmp.ne.s32.totalorder %s94, %s97
      %p103 = scmp.eq.s32.totalorder %s16, 0
      %p104 = por %p102, %p103
      %p105 = scmp.ne.s32.totalorder %s94, %s97
      %p106 = scmp.eq.s32.totalorder %s21, 1
      %p107 = por %p105, %p106
      %p108 = scmp.ne.s32.totalorder %s97, %s98
      %p109 = scmp.eq.s32.totalorder %s21, 0
      %p110 = por %p108, %p109
      %p111 = scmp.ne.s32.totalorder %s97, %s98
      %p112 = scmp.eq.s32.totalorder %s22, 1
      %p113 = por %p111, %p112
      %p115 = scmp.ne.s32.totalorder %s98, %s114
      %p116 = scmp.eq.s32.totalorder %s22, 0
      %p117 = por %p115, %p116
      %p118 = scmp.le.s32.totalorder 1, %s16
      %p119 = scmp.lt.s32.totalorder %s16, 3
      %p120 = pnand %p118, %p119
      %p121 = pneg %p120
      // Predicated region
      $region9: #{item_tower_forward.1} parent=5 // pred_check
        _
      $region10: #{item_tower_forward.1} parent=5 // pred_check_branch
        %123 = sbr.rel (%p120) target = $region12
      $region11: #{item_tower_forward.1} parent=5 // pred_region
        %s124 = ssub.s32 %s16, 1
        // Predicated region
        $region13: #{item_tower_forward.1} parent=11 // pred_check
          %p125 = pneg %p63
        $region14: #{item_tower_forward.1} parent=11 // pred_check_branch
          %127 = sbr.rel (%p125) target = $region16
        $region15: #{item_tower_forward.1} parent=11 // pred_region
          %129 = vsyncadd [#allocation6], 0
          %s130 = sshll.u32 %s1, 4
          %s131 = int_to_ptr.hbm [resolvable:$true] %s130
          %s132 = sshll.u32 [#allocation5], 4
          %s133 = int_to_ptr.vmem [resolvable:$true] %s132
          %138 = dma.hbm_to_vmem [thread:$0]  %s131, 9216, %s133, [#allocation6], 192, 192, 12
        $region16: #{item_tower_forward.1} parent=11 // pred_fallthru
          _
        // Predicated region
        $region17: #{item_tower_forward.1} parent=11 // pred_check
          %p139 = pneg %p84
        $region18: #{item_tower_forward.1} parent=11 // pred_check_branch
          %141 = sbr.rel (%p139) target = $region20
        $region19: #{item_tower_forward.1} parent=11 // pred_region
          _
        $region20: #{item_tower_forward.1} parent=11 // pred_fallthru
          _
      $region12: #{item_tower_forward.1} parent=5 // pred_fallthru
        _
      %p142 = scmp.lt.s32.totalorder %s16, 2
      // Predicated region
      $region21: #{item_tower_forward.1} parent=5 // pred_check
        %p143 = pneg %p142
      $region22: #{item_tower_forward.1} parent=5 // pred_check_branch
        %145 = sbr.rel (%p143) target = $region24
      $region23: #{item_tower_forward.1} parent=5 // pred_region
        // Predicated region
        $region25: #{item_tower_forward.1} parent=23 // pred_check
          %p146 = pneg %p36
        $region26: #{item_tower_forward.1} parent=23 // pred_check_branch
          %148 = sbr.rel (%p146) target = $region28
        $region27: #{item_tower_forward.1} parent=23 // pred_region
          %s149 = sand.u32 %s26, 1
          %s150 = scalar_lea.sflag [#allocation3], %s149
          %s151 = sand.u32 %s26, 1
          %s152 = smul.addr %s151, 96
          %s153 = scalar_lea.vmem [#allocation2], %s152
          %s154 = smul.u32 4, %s16
          %s155 = ssub.s32 5, %s154
          %p156 = scmp.lt.s32.totalorder %s155, 4
          %s157 = scalar_select %p156, %s155, 4
          %s158 = smul.u32 8, %s157
          %s159 = smul.u32 %s158, 3
          %s160 = ssub.s32 96, %s159
          %s161 = sshll.u32 %s160, 4
          %162 = vsyncadd %s150, %s161
          %p163 = scmp.ne.s32.totalorder 0, %s159
          %s164 = smul.addr %s154, 3
          %s165 = smul.addr %s164, 8
          %s166 = scalar_lea.hbm %s0, %s165
          %s167 = smul.u32 24, %s157
          %s168 = sshll.u32 %s166, 4
          %s169 = int_to_ptr.hbm [resolvable:$true] %s168
          %s170 = sshll.u32 %s153, 4
          %s171 = int_to_ptr.vmem [resolvable:$true] %s170
          %s172 = sshll.u32 %s167, 4
          %176 = dma.hbm_to_vmem [thread:$0]  (%p163), %s169, %s172, %s171, %s150, 384, 384, 24
        $region28: #{item_tower_forward.1} parent=23 // pred_fallthru
          _
      $region24: #{item_tower_forward.1} parent=5 // pred_fallthru
        _
      %p177 = scmp.le.s32.totalorder 1, %s16
      %p178 = scmp.lt.s32.totalorder %s16, 3
      %p179 = pnand %p177, %p178
      %p180 = pneg %p179
      // Predicated region
      $region29: #{item_tower_forward.1} parent=5 // pred_check
        _
      $region30: #{item_tower_forward.1} parent=5 // pred_check_branch
        %182 = sbr.rel (%p179) target = $region32
      $region31: #{item_tower_forward.1} parent=5 // pred_region
        %s183 = ssub.s32 %s16, 1
        %s184 = sand.u32 %s29, 1
        %s185 = scalar_lea.sflag [#allocation3], %s184
        %s186 = sand.u32 %s29, 1
        %s187 = smul.addr %s186, 96
        %s188 = scalar_lea.vmem [#allocation2], %s187
        // Predicated region
        $region33: #{item_tower_forward.1} parent=31 // pred_check
          %p189 = pneg %p42
        $region34: #{item_tower_forward.1} parent=31 // pred_check_branch
          %191 = sbr.rel (%p189) target = $region36
        $region35: #{item_tower_forward.1} parent=31 // pred_region
          %193 = dma.done %s185, 1536
        $region36: #{item_tower_forward.1} parent=31 // pred_fallthru
          _
        // Predicated region
        $region37: #{item_tower_forward.1} parent=31 // pred_check
          %p194 = pneg %p63
        $region38: #{item_tower_forward.1} parent=31 // pred_check_branch
          %196 = sbr.rel (%p194) target = $region40
        $region39: #{item_tower_forward.1} parent=31 // pred_region
          %198 = dma.done [#allocation6], 9216
        $region40: #{item_tower_forward.1} parent=31 // pred_fallthru
          _
        %s199 = sand.u32 %s29, 1
        %s200 = scalar_lea.sflag [#allocation3], %s199
        %s201 = sand.u32 %s29, 1
        %s202 = smul.addr %s201, 96
        %s203 = scalar_lea.vmem [#allocation2], %s202
        %p204 = pneg %p42
        %p205 = pneg %p39
        %p206 = pneg %p63
        %p207 = pneg %p60
        %p208 = pneg %p84
        %p209 = pneg %p81
        %p210 = pneg %p110
        %p211 = pneg %p107
        %s212 = sand.u32 %s97, 1
        %s213 = scalar_lea.sflag [#allocation4], %s212
        %s214 = sand.u32 %s97, 1
        %s215 = smul.addr %s214, 96
        %s216 = scalar_lea.vmem [#allocation7], %s215
        %s217 = smul.u32 4, %s21
        %s218 = ssub.s32 5, %s217
        %p219 = scmp.lt.s32.totalorder %s218, 4
        %s220 = scalar_select %p219, %s218, 4
        %s221 = smul.u32 8, %s220
        %s222 = smul.u32 %s221, 3
        %s223 = smul.u32 4, %s21
        %s224 = ssub.s32 5, %s223
        %p225 = scmp.lt.s32.totalorder %s224, 4
        %s226 = scalar_select %p225, %s224, 4
        %s227 = smul.u32 8, %s226
        %s228 = smul.u32 %s227, 3
        %v229 = vld [vmem:[%s188] sm:$0xff]
        %v230 = vld [vmem:[%s188 + $0x8] sm:$0xff]
        %v231 = vld [vmem:[%s188 + $0x10] sm:$0xff]
        %v232 = vld [vmem:[%s188 + $0x18] sm:$0xff]
        %v233 = vld [vmem:[%s188 + $0x20] sm:$0xff]
        %v234 = vld [vmem:[%s188 + $0x28] sm:$0xff]
        %v235 = vld [vmem:[%s188 + $0x30] sm:$0xff]
        %v236 = vld [vmem:[%s188 + $0x38] sm:$0xff]
        %v237 = vld [vmem:[%s188 + $0x40] sm:$0xff]
        %v238 = vld [vmem:[%s188 + $0x48] sm:$0xff]
        %v239 = vld [vmem:[%s188 + $0x50] sm:$0xff]
        %v240 = vld [vmem:[%s188 + $0x58] sm:$0xff]
        %v241 = vpack.c.bf16 %v232, %v229
        %v242 = vpack.c.bf16 %v233, %v230
        %v243 = vpack.c.bf16 %v234, %v231
        %v244 = vpack.c.bf16 %v238, %v235
        %v245 = vpack.c.bf16 %v239, %v236
        %v246 = vpack.c.bf16 %v240, %v237
        %v247 = vld [vmem:[#allocation5] sm:$0xff]
        %v248 = vld [vmem:[#allocation5 + $0x8] sm:$0xf]
        %v249 = vld [vmem:[#allocation5 + $0xc] sm:$0xff]
        %v250 = vld [vmem:[#allocation5 + $0x14] sm:$0xf]
        %v251 = vld [vmem:[#allocation5 + $0x18] sm:$0xff]
        %v252 = vld [vmem:[#allocation5 + $0x20] sm:$0xf]
        %v253 = vld [vmem:[#allocation5 + $0x24] sm:$0xff]
        %v254 = vld [vmem:[#allocation5 + $0x2c] sm:$0xf]
        %v255 = vld [vmem:[#allocation5 + $0x30] sm:$0xff]
        %v256 = vld [vmem:[#allocation5 + $0x38] sm:$0xf]
        %v257 = vld [vmem:[#allocation5 + $0x3c] sm:$0xff]
        %v258 = vld [vmem:[#allocation5 + $0x44] sm:$0xf]
        %v259 = vld [vmem:[#allocation5 + $0x48] sm:$0xff]
        %v260 = vld [vmem:[#allocation5 + $0x50] sm:$0xf]
        %v261 = vld [vmem:[#allocation5 + $0x54] sm:$0xff]
        %v262 = vld [vmem:[#allocation5 + $0x5c] sm:$0xf]
        %v263 = vld [vmem:[#allocation5 + $0x60] sm:$0xff]
        %v264 = vld [vmem:[#allocation5 + $0x68] sm:$0xf]
        %v265 = vld [vmem:[#allocation5 + $0x6c] sm:$0xff]
        %v266 = vld [vmem:[#allocation5 + $0x74] sm:$0xf]
        %v267 = vld [vmem:[#allocation5 + $0x78] sm:$0xff]
        %v268 = vld [vmem:[#allocation5 + $0x80] sm:$0xf]
        %v269 = vld [vmem:[#allocation5 + $0x84] sm:$0xff]
        %v270 = vld [vmem:[#allocation5 + $0x8c] sm:$0xf]
        %v271 = vld [vmem:[#allocation5 + $0x90] sm:$0xff]
        %v272 = vld [vmem:[#allocation5 + $0x98] sm:$0xf]
        %v273 = vld [vmem:[#allocation5 + $0x9c] sm:$0xff]
        %v274 = vld [vmem:[#allocation5 + $0xa4] sm:$0xf]
        %v275 = vld [vmem:[#allocation5 + $0xa8] sm:$0xff]
        %v276 = vld [vmem:[#allocation5 + $0xb0] sm:$0xf]
        %v277 = vld [vmem:[#allocation5 + $0xb4] sm:$0xff]
        %v278 = vld [vmem:[#allocation5 + $0xbc] sm:$0xf]
        %v279 = vld [vmem:[#allocation5 + $0xc0] sm:$0xff]
        %v280 = vld [vmem:[#allocation5 + $0xc8] sm:$0xf]
        %v281 = vld [vmem:[#allocation5 + $0xcc] sm:$0xff]
        %v282 = vld [vmem:[#allocation5 + $0xd4] sm:$0xf]
        %v283 = vld [vmem:[#allocation5 + $0xd8] sm:$0xff]
        %v284 = vld [vmem:[#allocation5 + $0xe0] sm:$0xf]
        %v285 = vld [vmem:[#allocation5 + $0xe4] sm:$0xff]
        %v286 = vld [vmem:[#allocation5 + $0xec] sm:$0xf]
        %v287 = vld [vmem:[#allocation5 + $0xf0] sm:$0xff]
        %v288 = vld [vmem:[#allocation5 + $0xf8] sm:$0xf]
        %v289 = vld [vmem:[#allocation5 + $0xfc] sm:$0xff]
        %v290 = vld [vmem:[#allocation5 + $0x104] sm:$0xf]
        %v291 = vld [vmem:[#allocation5 + $0x108] sm:$0xff]
        %v292 = vld [vmem:[#allocation5 + $0x110] sm:$0xf]
        %v293 = vld [vmem:[#allocation5 + $0x114] sm:$0xff]
        %v294 = vld [vmem:[#allocation5 + $0x11c] sm:$0xf]
        %v295 = vld [vmem:[#allocation5 + $0x120] sm:$0xff]
        %v296 = vld [vmem:[#allocation5 + $0x128] sm:$0xf]
        %v297 = vld [vmem:[#allocation5 + $0x12c] sm:$0xff]
        %v298 = vld [vmem:[#allocation5 + $0x134] sm:$0xf]
        %v299 = vld [vmem:[#allocation5 + $0x138] sm:$0xff]
        %v300 = vld [vmem:[#allocation5 + $0x140] sm:$0xf]
        %v301 = vld [vmem:[#allocation5 + $0x144] sm:$0xff]
        %v302 = vld [vmem:[#allocation5 + $0x14c] sm:$0xf]
        %v303 = vld [vmem:[#allocation5 + $0x150] sm:$0xff]
        %v304 = vld [vmem:[#allocation5 + $0x158] sm:$0xf]
        %v305 = vld [vmem:[#allocation5 + $0x15c] sm:$0xff]
        %v306 = vld [vmem:[#allocation5 + $0x164] sm:$0xf]
        %v307 = vld [vmem:[#allocation5 + $0x168] sm:$0xff]
        %v308 = vld [vmem:[#allocation5 + $0x170] sm:$0xf]
        %v309 = vld [vmem:[#allocation5 + $0x174] sm:$0xff]
        %v310 = vld [vmem:[#allocation5 + $0x17c] sm:$0xf]
        %v311 = vld [vmem:[#allocation5 + $0x180] sm:$0xff]
        %v312 = vld [vmem:[#allocation5 + $0x188] sm:$0xf]
        %v313 = vld [vmem:[#allocation5 + $0x18c] sm:$0xff]
        %v314 = vld [vmem:[#allocation5 + $0x194] sm:$0xf]
        %v315 = vld [vmem:[#allocation5 + $0x198] sm:$0xff]
        %v316 = vld [vmem:[#allocation5 + $0x1a0] sm:$0xf]
        %v317 = vld [vmem:[#allocation5 + $0x1a4] sm:$0xff]
        %v318 = vld [vmem:[#allocation5 + $0x1ac] sm:$0xf]
        %v319 = vld [vmem:[#allocation5 + $0x1b0] sm:$0xff]
        %v320 = vld [vmem:[#allocation5 + $0x1b8] sm:$0xf]
        %v321 = vld [vmem:[#allocation5 + $0x1bc] sm:$0xff]
        %v322 = vld [vmem:[#allocation5 + $0x1c4] sm:$0xf]
        %v323 = vld [vmem:[#allocation5 + $0x1c8] sm:$0xff]
        %v324 = vld [vmem:[#allocation5 + $0x1d0] sm:$0xf]
        %v325 = vld [vmem:[#allocation5 + $0x1d4] sm:$0xff]
        %v326 = vld [vmem:[#allocation5 + $0x1dc] sm:$0xf]
        %v327 = vld [vmem:[#allocation5 + $0x1e0] sm:$0xff]
        %v328 = vld [vmem:[#allocation5 + $0x1e8] sm:$0xf]
        %v329 = vld [vmem:[#allocation5 + $0x1ec] sm:$0xff]
        %v330 = vld [vmem:[#allocation5 + $0x1f4] sm:$0xf]
        %v331 = vld [vmem:[#allocation5 + $0x1f8] sm:$0xff]
        %v332 = vld [vmem:[#allocation5 + $0x200] sm:$0xf]
        %v333 = vld [vmem:[#allocation5 + $0x204] sm:$0xff]
        %v334 = vld [vmem:[#allocation5 + $0x20c] sm:$0xf]
        %v335 = vld [vmem:[#allocation5 + $0x210] sm:$0xff]
        %v336 = vld [vmem:[#allocation5 + $0x218] sm:$0xf]
        %v337 = vld [vmem:[#allocation5 + $0x21c] sm:$0xff]
        %v338 = vld [vmem:[#allocation5 + $0x224] sm:$0xf]
        %v339 = vld [vmem:[#allocation5 + $0x228] sm:$0xff]
        %v340 = vld [vmem:[#allocation5 + $0x230] sm:$0xf]
        %v341 = vld [vmem:[#allocation5 + $0x234] sm:$0xff]
        %v342 = vld [vmem:[#allocation5 + $0x23c] sm:$0xf]
        %v343 = vld [vmem:[%s2] sm:$0x7]
        %v345 = vperm.slane %v343, 0
        %v346 = vperm.slane %v343, 1
        %v347 = vperm.slane %v343, 2
        %v447 = vunpack.c.l.b16 %v247
        %v448 = vunpack.c.h.b16 %v247
        %v449 = vunpack.c.l.b16 %v248
        %v450 = vunpack.c.l.b16 %v249
        %v451 = vunpack.c.h.b16 %v249
        %v452 = vunpack.c.l.b16 %v250
        %v453 = vunpack.c.l.b16 %v251
        %v454 = vunpack.c.h.b16 %v251
        %v455 = vunpack.c.l.b16 %v252
        %v456 = vunpack.c.l.b16 %v253
        %v457 = vunpack.c.h.b16 %v253
        %v458 = vunpack.c.l.b16 %v254
        %v459 = vunpack.c.l.b16 %v255
        %v460 = vunpack.c.h.b16 %v255
        %v461 = vunpack.c.l.b16 %v256
        %v462 = vunpack.c.l.b16 %v257
        %v463 = vunpack.c.h.b16 %v257
        %v464 = vunpack.c.l.b16 %v258
        %v465 = vunpack.c.l.b16 %v259
        %v466 = vunpack.c.h.b16 %v259
        %v467 = vunpack.c.l.b16 %v260
        %v468 = vunpack.c.l.b16 %v261
        %v469 = vunpack.c.h.b16 %v261
        %v470 = vunpack.c.l.b16 %v262
        %v471 = vunpack.c.l.b16 %v263
        %v472 = vunpack.c.h.b16 %v263
        %v473 = vunpack.c.l.b16 %v264
        %v474 = vunpack.c.l.b16 %v265
        %v475 = vunpack.c.h.b16 %v265
        %v476 = vunpack.c.l.b16 %v266
        %v477 = vunpack.c.l.b16 %v267
        %v478 = vunpack.c.h.b16 %v267
        %v479 = vunpack.c.l.b16 %v268
        %v480 = vunpack.c.l.b16 %v269
        %v481 = vunpack.c.h.b16 %v269
        %v482 = vunpack.c.l.b16 %v270
        %v483 = vunpack.c.l.b16 %v271
        %v484 = vunpack.c.h.b16 %v271
        %v485 = vunpack.c.l.b16 %v272
        %v486 = vunpack.c.l.b16 %v273
        %v487 = vunpack.c.h.b16 %v273
        %v488 = vunpack.c.l.b16 %v274
        %v489 = vunpack.c.l.b16 %v275
        %v490 = vunpack.c.h.b16 %v275
        %v491 = vunpack.c.l.b16 %v276
        %v492 = vunpack.c.l.b16 %v277
        %v493 = vunpack.c.h.b16 %v277
        %v494 = vunpack.c.l.b16 %v278
        %v495 = vunpack.c.l.b16 %v279
        %v496 = vunpack.c.h.b16 %v279
        %v497 = vunpack.c.l.b16 %v280
        %v498 = vunpack.c.l.b16 %v281
        %v499 = vunpack.c.h.b16 %v281
        %v500 = vunpack.c.l.b16 %v282
        %v501 = vunpack.c.l.b16 %v283
        %v502 = vunpack.c.h.b16 %v283
        %v503 = vunpack.c.l.b16 %v284
        %v504 = vunpack.c.l.b16 %v285
        %v505 = vunpack.c.h.b16 %v285
        %v506 = vunpack.c.l.b16 %v286
        %v507 = vunpack.c.l.b16 %v287
        %v508 = vunpack.c.h.b16 %v287
        %v509 = vunpack.c.l.b16 %v288
        %v510 = vunpack.c.l.b16 %v289
        %v511 = vunpack.c.h.b16 %v289
        %v512 = vunpack.c.l.b16 %v290
        %v513 = vunpack.c.l.b16 %v291
        %v514 = vunpack.c.h.b16 %v291
        %v515 = vunpack.c.l.b16 %v292
        %v516 = vunpack.c.l.b16 %v293
        %v517 = vunpack.c.h.b16 %v293
        %v518 = vunpack.c.l.b16 %v294
        %v519 = vunpack.c.l.b16 %v295
        %v520 = vunpack.c.h.b16 %v295
        %v521 = vunpack.c.l.b16 %v296
        %v522 = vunpack.c.l.b16 %v297
        %v523 = vunpack.c.h.b16 %v297
        %v524 = vunpack.c.l.b16 %v298
        %v525 = vunpack.c.l.b16 %v299
        %v526 = vunpack.c.h.b16 %v299
        %v527 = vunpack.c.l.b16 %v300
        %v528 = vunpack.c.l.b16 %v301
        %v529 = vunpack.c.h.b16 %v301
        %v530 = vunpack.c.l.b16 %v302
        %v531 = vunpack.c.l.b16 %v303
        %v532 = vunpack.c.h.b16 %v303
        %v533 = vunpack.c.l.b16 %v304
        %v534 = vunpack.c.l.b16 %v305
        %v535 = vunpack.c.h.b16 %v305
        %v536 = vunpack.c.l.b16 %v306
        %v537 = vunpack.c.l.b16 %v307
        %v538 = vunpack.c.h.b16 %v307
        %v539 = vunpack.c.l.b16 %v308
        %v540 = vunpack.c.l.b16 %v309
        %v541 = vunpack.c.h.b16 %v309
        %v542 = vunpack.c.l.b16 %v310
        %v543 = vunpack.c.l.b16 %v311
        %v544 = vunpack.c.h.b16 %v311
        %v545 = vunpack.c.l.b16 %v312
        %v546 = vunpack.c.l.b16 %v313
        %v547 = vunpack.c.h.b16 %v313
        %v548 = vunpack.c.l.b16 %v314
        %v549 = vunpack.c.l.b16 %v315
        %v550 = vunpack.c.h.b16 %v315
        %v551 = vunpack.c.l.b16 %v316
        %v552 = vunpack.c.l.b16 %v317
        %v553 = vunpack.c.h.b16 %v317
        %v554 = vunpack.c.l.b16 %v318
        %v555 = vunpack.c.l.b16 %v319
        %v556 = vunpack.c.h.b16 %v319
        %v557 = vunpack.c.l.b16 %v320
        %v558 = vunpack.c.l.b16 %v321
        %v559 = vunpack.c.h.b16 %v321
        %v560 = vunpack.c.l.b16 %v322
        %v561 = vunpack.c.l.b16 %v323
        %v562 = vunpack.c.h.b16 %v323
        %v563 = vunpack.c.l.b16 %v324
        %v564 = vunpack.c.l.b16 %v325
        %v565 = vunpack.c.h.b16 %v325
        %v566 = vunpack.c.l.b16 %v326
        %v567 = vunpack.c.l.b16 %v327
        %v568 = vunpack.c.h.b16 %v327
        %v569 = vunpack.c.l.b16 %v328
        %v570 = vunpack.c.l.b16 %v329
        %v571 = vunpack.c.h.b16 %v329
        %v572 = vunpack.c.l.b16 %v330
        %v573 = vunpack.c.l.b16 %v331
        %v574 = vunpack.c.h.b16 %v331
        %v575 = vunpack.c.l.b16 %v332
        %v576 = vunpack.c.l.b16 %v333
        %v577 = vunpack.c.h.b16 %v333
        %v578 = vunpack.c.l.b16 %v334
        %v579 = vunpack.c.l.b16 %v335
        %v580 = vunpack.c.h.b16 %v335
        %v581 = vunpack.c.l.b16 %v336
        %v582 = vunpack.c.l.b16 %v337
        %v583 = vunpack.c.h.b16 %v337
        %v584 = vunpack.c.l.b16 %v338
        %v585 = vunpack.c.l.b16 %v339
        %v586 = vunpack.c.h.b16 %v339
        %v587 = vunpack.c.l.b16 %v340
        %v588 = vunpack.c.l.b16 %v341
        %v589 = vunpack.c.h.b16 %v341
        %v590 = vunpack.c.l.b16 %v342
        %v591 = vpack.c.b16 %v450, %v447
        %v592 = vpack.c.b16 %v451, %v448
        %v593 = vpack.c.b16 %v452, %v449
        %v594 = vpack.c.b16 %v456, %v453
        %v595 = vpack.c.b16 %v457, %v454
        %v596 = vpack.c.b16 %v458, %v455
        %v597 = vpack.c.b16 %v462, %v459
        %v598 = vpack.c.b16 %v463, %v460
        %v599 = vpack.c.b16 %v464, %v461
        %v600 = vpack.c.b16 %v468, %v465
        %v601 = vpack.c.b16 %v469, %v466
        %v602 = vpack.c.b16 %v470, %v467
        %v603 = vpack.c.b16 %v474, %v471
        %v604 = vpack.c.b16 %v475, %v472
        %v605 = vpack.c.b16 %v476, %v473
        %v606 = vpack.c.b16 %v480, %v477
        %v607 = vpack.c.b16 %v481, %v478
        %v608 = vpack.c.b16 %v482, %v479
        %v609 = vpack.c.b16 %v486, %v483
        %v610 = vpack.c.b16 %v487, %v484
        %v611 = vpack.c.b16 %v488, %v485
        %v612 = vpack.c.b16 %v492, %v489
        %v613 = vpack.c.b16 %v493, %v490
        %v614 = vpack.c.b16 %v494, %v491
        %v615 = vpack.c.b16 %v498, %v495
        %v616 = vpack.c.b16 %v499, %v496
        %v617 = vpack.c.b16 %v500, %v497
        %v618 = vpack.c.b16 %v504, %v501
        %v619 = vpack.c.b16 %v505, %v502
        %v620 = vpack.c.b16 %v506, %v503
        %v621 = vpack.c.b16 %v510, %v507
        %v622 = vpack.c.b16 %v511, %v508
        %v623 = vpack.c.b16 %v512, %v509
        %v624 = vpack.c.b16 %v516, %v513
        %v625 = vpack.c.b16 %v517, %v514
        %v626 = vpack.c.b16 %v518, %v515
        %v627 = vpack.c.b16 %v522, %v519
        %v628 = vpack.c.b16 %v523, %v520
        %v629 = vpack.c.b16 %v524, %v521
        %v630 = vpack.c.b16 %v528, %v525
        %v631 = vpack.c.b16 %v529, %v526
        %v632 = vpack.c.b16 %v530, %v527
        %v633 = vpack.c.b16 %v534, %v531
        %v634 = vpack.c.b16 %v535, %v532
        %v635 = vpack.c.b16 %v536, %v533
        %v636 = vpack.c.b16 %v540, %v537
        %v637 = vpack.c.b16 %v541, %v538
        %v638 = vpack.c.b16 %v542, %v539
        %v639 = vpack.c.b16 %v546, %v543
        %v640 = vpack.c.b16 %v547, %v544
        %v641 = vpack.c.b16 %v548, %v545
        %v642 = vpack.c.b16 %v552, %v549
        %v643 = vpack.c.b16 %v553, %v550
        %v644 = vpack.c.b16 %v554, %v551
        %v645 = vpack.c.b16 %v558, %v555
        %v646 = vpack.c.b16 %v559, %v556
        %v647 = vpack.c.b16 %v560, %v557
        %v648 = vpack.c.b16 %v564, %v561
        %v649 = vpack.c.b16 %v565, %v562
        %v650 = vpack.c.b16 %v566, %v563
        %v651 = vpack.c.b16 %v570, %v567
        %v652 = vpack.c.b16 %v571, %v568
        %v653 = vpack.c.b16 %v572, %v569
        %v654 = vpack.c.b16 %v576, %v573
        %v655 = vpack.c.b16 %v577, %v574
        %v656 = vpack.c.b16 %v578, %v575
        %v657 = vpack.c.b16 %v582, %v579
        %v658 = vpack.c.b16 %v583, %v580
        %v659 = vpack.c.b16 %v584, %v581
        %v660 = vpack.c.b16 %v588, %v585
        %v661 = vpack.c.b16 %v589, %v586
        %v662 = vpack.c.b16 %v590, %v587
        %735 = vmatpush.bf16.msra.mxu0 %v612
        %736 = vmatpush.bf16.msra.mxu0 %v609
        %737 = vmatpush.bf16.msra.mxu0 %v606
        %738 = vmatpush.bf16.msra.mxu0 %v603
        %739 = vmatpush.bf16.msra.mxu0 %v600
        %740 = vmatpush.bf16.msra.mxu0 %v597
        %741 = vmatpush.bf16.msra.mxu0 %v594
        %742 = vmatpush.bf16.msra.mxu0 %v591
        %743 = vmatmul.bf16.gmra.mxu0 %v241
        %v744 = vpop.f32.mrf.mxu0
        %v745 = vadd.f32 %v345, %v744
        %v746 = vpop.f32.mrf.mxu0
        %v747 = vadd.f32 %v345, %v746
        %748 = vmatmul.bf16.gmra.mxu0 %v244
        %v749 = vpop.f32.mrf.mxu0
        %v750 = vadd.f32 %v345, %v749
        %v751 = vpop.f32.mrf.mxu0
        %v752 = vadd.f32 %v345, %v751
        %753 = vdwg.mxu0
        %754 = vmatpush.bf16.msra.mxu0 %v636
        %755 = vmatpush.bf16.msra.mxu0 %v633
        %756 = vmatpush.bf16.msra.mxu0 %v630
        %757 = vmatpush.bf16.msra.mxu0 %v627
        %758 = vmatpush.bf16.msra.mxu0 %v624
        %759 = vmatpush.bf16.msra.mxu0 %v621
        %760 = vmatpush.bf16.msra.mxu0 %v618
        %761 = vmatpush.bf16.msra.mxu0 %v615
        %762 = vmatmul.bf16.gmra.mxu0 %v242
        %v763 = vpop.f32.mrf.mxu0
        %v764 = vadd.f32 %v745, %v763
        %v765 = vpop.f32.mrf.mxu0
        %v766 = vadd.f32 %v747, %v765
        %767 = vmatmul.bf16.gmra.mxu0 %v245
        %v768 = vpop.f32.mrf.mxu0
        %v769 = vadd.f32 %v750, %v768
        %v770 = vpop.f32.mrf.mxu0
        %v771 = vadd.f32 %v752, %v770
        %772 = vdwg.mxu0
        %773 = vmatpush.bf16.msra.mxu0 %v660
        %774 = vmatpush.bf16.msra.mxu0 %v657
        %775 = vmatpush.bf16.msra.mxu0 %v654
        %776 = vmatpush.bf16.msra.mxu0 %v651
        %777 = vmatpush.bf16.msra.mxu0 %v648
        %778 = vmatpush.bf16.msra.mxu0 %v645
        %779 = vmatpush.bf16.msra.mxu0 %v642
        %780 = vmatpush.bf16.msra.mxu0 %v639
        %781 = vmatmul.bf16.gmra.mxu0 %v243
        %v782 = vpop.f32.mrf.mxu0
        %v783 = vadd.f32 %v764, %v782
        %v784 = vpop.f32.mrf.mxu0
        %v785 = vadd.f32 %v766, %v784
        %786 = vmatmul.bf16.gmra.mxu0 %v246
        %v787 = vpop.f32.mrf.mxu0
        %v788 = vadd.f32 %v769, %v787
        %v789 = vpop.f32.mrf.mxu0
        %v790 = vadd.f32 %v771, %v789
        %791 = vdwg.mxu0
        %792 = vmatpush.bf16.msra.mxu0 %v613
        %793 = vmatpush.bf16.msra.mxu0 %v610
        %794 = vmatpush.bf16.msra.mxu0 %v607
        %795 = vmatpush.bf16.msra.mxu0 %v604
        %796 = vmatpush.bf16.msra.mxu0 %v601
        %797 = vmatpush.bf16.msra.mxu0 %v598
        %798 = vmatpush.bf16.msra.mxu0 %v595
        %799 = vmatpush.bf16.msra.mxu0 %v592
        %800 = vmatmul.bf16.gmra.mxu0 %v241
        %v801 = vpop.f32.mrf.mxu0
        %v802 = vadd.f32 %v346, %v801
        %v803 = vpop.f32.mrf.mxu0
        %v804 = vadd.f32 %v346, %v803
        %805 = vmatmul.bf16.gmra.mxu0 %v244
        %v806 = vpop.f32.mrf.mxu0
        %v807 = vadd.f32 %v346, %v806
        %v808 = vpop.f32.mrf.mxu0
        %v809 = vadd.f32 %v346, %v808
        %810 = vdwg.mxu0
        %811 = vmatpush.bf16.msra.mxu0 %v637
        %812 = vmatpush.bf16.msra.mxu0 %v634
        %813 = vmatpush.bf16.msra.mxu0 %v631
        %814 = vmatpush.bf16.msra.mxu0 %v628
        %815 = vmatpush.bf16.msra.mxu0 %v625
        %816 = vmatpush.bf16.msra.mxu0 %v622
        %817 = vmatpush.bf16.msra.mxu0 %v619
        %818 = vmatpush.bf16.msra.mxu0 %v616
        %819 = vmatmul.bf16.gmra.mxu0 %v242
        %v820 = vpop.f32.mrf.mxu0
        %v821 = vadd.f32 %v802, %v820
        %v822 = vpop.f32.mrf.mxu0
        %v823 = vadd.f32 %v804, %v822
        %824 = vmatmul.bf16.gmra.mxu0 %v245
        %v825 = vpop.f32.mrf.mxu0
        %v826 = vadd.f32 %v807, %v825
        %v827 = vpop.f32.mrf.mxu0
        %v828 = vadd.f32 %v809, %v827
        %829 = vdwg.mxu0
        %830 = vmatpush.bf16.msra.mxu0 %v661
        %831 = vmatpush.bf16.msra.mxu0 %v658
        %832 = vmatpush.bf16.msra.mxu0 %v655
        %833 = vmatpush.bf16.msra.mxu0 %v652
        %834 = vmatpush.bf16.msra.mxu0 %v649
        %835 = vmatpush.bf16.msra.mxu0 %v646
        %836 = vmatpush.bf16.msra.mxu0 %v643
        %837 = vmatpush.bf16.msra.mxu0 %v640
        %838 = vmatmul.bf16.gmra.mxu0 %v243
        %v839 = vpop.f32.mrf.mxu0
        %v840 = vadd.f32 %v821, %v839
        %v841 = vpop.f32.mrf.mxu0
        %v842 = vadd.f32 %v823, %v841
        %843 = vmatmul.bf16.gmra.mxu0 %v246
        %v844 = vpop.f32.mrf.mxu0
        %v845 = vadd.f32 %v826, %v844
        %v846 = vpop.f32.mrf.mxu0
        %v847 = vadd.f32 %v828, %v846
        %848 = vdwg.mxu0
        %849 = vmatpush.bf16.msra.mxu0 %v614
        %850 = vmatpush.bf16.msra.mxu0 %v611
        %851 = vmatpush.bf16.msra.mxu0 %v608
        %852 = vmatpush.bf16.msra.mxu0 %v605
        %853 = vmatpush.bf16.msra.mxu0 %v602
        %854 = vmatpush.bf16.msra.mxu0 %v599
        %855 = vmatpush.bf16.msra.mxu0 %v596
        %856 = vmatpush.bf16.msra.mxu0 %v593
        %857 = vmatmul.bf16.gmra.mxu0 %v241
        %v858 = vpop.f32.mrf.mxu0
        %v859 = vadd.f32 %v347, %v858
        %v860 = vpop.f32.mrf.mxu0
        %v861 = vadd.f32 %v347, %v860
        %862 = vmatmul.bf16.gmra.mxu0 %v244
        %v863 = vpop.f32.mrf.mxu0
        %v864 = vadd.f32 %v347, %v863
        %v865 = vpop.f32.mrf.mxu0
        %v866 = vadd.f32 %v347, %v865
        %867 = vdwg.mxu0
        %868 = vmatpush.bf16.msra.mxu0 %v638
        %869 = vmatpush.bf16.msra.mxu0 %v635
        %870 = vmatpush.bf16.msra.mxu0 %v632
        %871 = vmatpush.bf16.msra.mxu0 %v629
        %872 = vmatpush.bf16.msra.mxu0 %v626
        %873 = vmatpush.bf16.msra.mxu0 %v623
        %874 = vmatpush.bf16.msra.mxu0 %v620
        %875 = vmatpush.bf16.msra.mxu0 %v617
        %876 = vmatmul.bf16.gmra.mxu0 %v242
        %v877 = vpop.f32.mrf.mxu0
        %v878 = vadd.f32 %v859, %v877
        %v879 = vpop.f32.mrf.mxu0
        %v880 = vadd.f32 %v861, %v879
        %881 = vmatmul.bf16.gmra.mxu0 %v245
        %v882 = vpop.f32.mrf.mxu0
        %v883 = vadd.f32 %v864, %v882
        %v884 = vpop.f32.mrf.mxu0
        %v885 = vadd.f32 %v866, %v884
        %886 = vdwg.mxu0
        %887 = vmatpush.bf16.msra.mxu0 %v662
        %888 = vmatpush.bf16.msra.mxu0 %v659
        %889 = vmatpush.bf16.msra.mxu0 %v656
        %890 = vmatpush.bf16.msra.mxu0 %v653
        %891 = vmatpush.bf16.msra.mxu0 %v650
        %892 = vmatpush.bf16.msra.mxu0 %v647
        %893 = vmatpush.bf16.msra.mxu0 %v644
        %894 = vmatpush.bf16.msra.mxu0 %v641
        %895 = vmatmul.bf16.gmra.mxu0 %v243
        %v896 = vpop.f32.mrf.mxu0
        %v897 = vadd.f32 %v878, %v896
        %v898 = vpop.f32.mrf.mxu0
        %v899 = vadd.f32 %v880, %v898
        %900 = vmatmul.bf16.gmra.mxu0 %v246
        %v901 = vpop.f32.mrf.mxu0
        %v902 = vadd.f32 %v883, %v901
        %v903 = vpop.f32.mrf.mxu0
        %v904 = vadd.f32 %v885, %v903
        %905 = vdwg.mxu0
        %v906 = vmul.f32 %v783, %v783
        %v907 = vmul.f32 %v840, %v840
        %v908 = vmul.f32 %v897, %v897
        %v909 = vmul.f32 %v785, %v785
        %v910 = vmul.f32 %v842, %v842
        %v911 = vmul.f32 %v899, %v899
        %v912 = vmul.f32 %v788, %v788
        %v913 = vmul.f32 %v845, %v845
        %v914 = vmul.f32 %v902, %v902
        %v915 = vmul.f32 %v790, %v790
        %v916 = vmul.f32 %v847, %v847
        %v917 = vmul.f32 %v904, %v904
        %v918 = vadd.f32 %v906, %v907
        %v919 = vadd.f32 %v918, %v908
        %920 = vadd.xlane.f32.xlu0 %v919
        %v921 = vpop.xlane.xlu0 %920
        %v922 = vadd.f32 %v909, %v910
        %v923 = vadd.f32 %v922, %v911
        %924 = vadd.xlane.f32.xlu0 %v923
        %v925 = vpop.xlane.xlu0 %924
        %v926 = vadd.f32 %v912, %v913
        %v927 = vadd.f32 %v926, %v914
        %928 = vadd.xlane.f32.xlu0 %v927
        %v929 = vpop.xlane.xlu0 %928
        %v930 = vadd.f32 %v915, %v916
        %v931 = vadd.f32 %v930, %v917
        %932 = vadd.xlane.f32.xlu0 %v931
        %v933 = vpop.xlane.xlu0 %932
        %v934 = vmax.f32 %v921, 1e-24
        %v935 = vmax.f32 %v925, 1e-24
        %v936 = vmax.f32 %v929, 1e-24
        %v937 = vmax.f32 %v933, 1e-24
        %v938 = vrsqrt.pop %v934
        %v939 = vmul.f32 %v938, %v934
        %v940 = vmul.f32 %v939, %v938
        %v941 = vmul.f32 0.5, %v940
        %v942 = vsub.f32 1.5, %v941
        %v943 = vmul.f32 %v938, %v942
        %vm944 = vweird.f32 %v934
        %vm945 = vweird.f32 %v938
        %vm946 = vmor %vm944, %vm945
        %v947 = vsel %vm946, %v938, %v943
        %v948 = vrsqrt.pop %v935
        %v949 = vmul.f32 %v948, %v935
        %v950 = vmul.f32 %v949, %v948
        %v951 = vmul.f32 0.5, %v950
        %v952 = vsub.f32 1.5, %v951
        %v953 = vmul.f32 %v948, %v952
        %vm954 = vweird.f32 %v935
        %vm955 = vweird.f32 %v948
        %vm956 = vmor %vm954, %vm955
        %v957 = vsel %vm956, %v948, %v953
        %v958 = vrsqrt.pop %v936
        %v959 = vmul.f32 %v958, %v936
        %v960 = vmul.f32 %v959, %v958
        %v961 = vmul.f32 0.5, %v960
        %v962 = vsub.f32 1.5, %v961
        %v963 = vmul.f32 %v958, %v962
        %vm964 = vweird.f32 %v936
        %vm965 = vweird.f32 %v958
        %vm966 = vmor %vm964, %vm965
        %v967 = vsel %vm966, %v958, %v963
        %v968 = vrsqrt.pop %v937
        %v969 = vmul.f32 %v968, %v937
        %v970 = vmul.f32 %v969, %v968
        %v971 = vmul.f32 0.5, %v970
        %v972 = vsub.f32 1.5, %v971
        %v973 = vmul.f32 %v968, %v972
        %vm974 = vweird.f32 %v937
        %vm975 = vweird.f32 %v968
        %vm976 = vmor %vm974, %vm975
        %v977 = vsel %vm976, %v968, %v973
        %v978 = vmul.f32 %v783, %v947
        %v979 = vmul.f32 %v840, %v947
        %v980 = vmul.f32 %v897, %v947
        %v981 = vmul.f32 %v785, %v957
        %v982 = vmul.f32 %v842, %v957
        %v983 = vmul.f32 %v899, %v957
        %v984 = vmul.f32 %v788, %v967
        %v985 = vmul.f32 %v845, %v967
        %v986 = vmul.f32 %v902, %v967
        %v987 = vmul.f32 %v790, %v977
        %v988 = vmul.f32 %v847, %v977
        %v989 = vmul.f32 %v904, %v977
        %990 = vst [vmem:[%s216] sm:$0xff] %v978
        %991 = vst [vmem:[%s216 + $0x8] sm:$0xff] %v979
        %992 = vst [vmem:[%s216 + $0x10] sm:$0xff] %v980
        %993 = vst [vmem:[%s216 + $0x18] sm:$0xff] %v981
        %994 = vst [vmem:[%s216 + $0x20] sm:$0xff] %v982
        %995 = vst [vmem:[%s216 + $0x28] sm:$0xff] %v983
        %996 = vst [vmem:[%s216 + $0x30] sm:$0xff] %v984
        %997 = vst [vmem:[%s216 + $0x38] sm:$0xff] %v985
        %998 = vst [vmem:[%s216 + $0x40] sm:$0xff] %v986
        %999 = vst [vmem:[%s216 + $0x48] sm:$0xff] %v987
        %1000 = vst [vmem:[%s216 + $0x50] sm:$0xff] %v988
        %1001 = vst [vmem:[%s216 + $0x58] sm:$0xff] %v989
        %s1002 = sand.u32 %s97, 1
        %s1003 = scalar_lea.sflag [#allocation4], %s1002
        %s1004 = sand.u32 %s97, 1
        %s1005 = smul.addr %s1004, 96
        %s1006 = scalar_lea.vmem [#allocation7], %s1005
        // Predicated region
        $region41: #{item_tower_forward.1} parent=31 // pred_check
          %p1007 = pneg %p107
        $region42: #{item_tower_forward.1} parent=31 // pred_check_branch
          %1009 = sbr.rel (%p1007) target = $region44
        $region43: #{item_tower_forward.1} parent=31 // pred_region
          %s1010 = smul.u32 4, %s21
          %s1011 = ssub.s32 5, %s1010
          %p1012 = scmp.lt.s32.totalorder %s1011, 4
          %s1013 = scalar_select %p1012, %s1011, 4
          %s1014 = smul.u32 8, %s1013
          %s1015 = smul.u32 %s1014, 3
          %s1016 = ssub.s32 96, %s1015
          %s1017 = sshll.u32 %s1016, 4
          %1018 = vsyncadd %s1003, %s1017
          %p1019 = scmp.ne.s32.totalorder 0, %s1015
          %s1020 = smul.addr %s1010, 3
          %s1021 = smul.addr %s1020, 8
          %s1022 = scalar_lea.hbm %s3, %s1021
          %s1023 = smul.u32 24, %s1013
          %s1024 = sshll.u32 %s1006, 4
          %s1025 = int_to_ptr.vmem [resolvable:$true] %s1024
          %s1026 = sshll.u32 %s1022, 4
          %s1027 = int_to_ptr.hbm [resolvable:$true] %s1026
          %s1028 = sshll.u32 %s1023, 4
          %1032 = dma.vmem_to_hbm [thread:$0]  (%p1019), %s1025, %s1028, %s1027, %s1003, 384, 384, 24
        $region44: #{item_tower_forward.1} parent=31 // pred_fallthru
          _
      $region32: #{item_tower_forward.1} parent=5 // pred_fallthru
        _
      %p1033 = scmp.le.s32.totalorder 2, %s16
      // Predicated region
      $region45: #{item_tower_forward.1} parent=5 // pred_check
        %p1034 = pneg %p1033
      $region46: #{item_tower_forward.1} parent=5 // pred_check_branch
        %1036 = sbr.rel (%p1034) target = $region48
      $region47: #{item_tower_forward.1} parent=5 // pred_region
        %s1037 = ssub.s32 %s16, 2
        // Predicated region
        $region49: #{item_tower_forward.1} parent=47 // pred_check
          %p1038 = pneg %p113
        $region50: #{item_tower_forward.1} parent=47 // pred_check_branch
          %1040 = sbr.rel (%p1038) target = $region52
        $region51: #{item_tower_forward.1} parent=47 // pred_region
          %s1041 = sand.u32 %s98, 1
          %s1042 = scalar_lea.sflag [#allocation4], %s1041
          %s1043 = sand.u32 %s98, 1
          %s1044 = smul.addr %s1043, 96
          %s1045 = scalar_lea.vmem [#allocation7], %s1044
          %1047 = dma.done %s1042, 1536
        $region52: #{item_tower_forward.1} parent=47 // pred_fallthru
          _
      $region48: #{item_tower_forward.1} parent=5 // pred_fallthru
        _
    $region6: #{item_tower_forward.1} parent=1 // loop_footer
      %s20 = sadd.s32 1, %s16
    $region7: #{item_tower_forward.1} parent=1 // loop_footer_branch
      %15 = sbr.rel target = $region3
    $region8: #{item_tower_forward.1} parent=1 // loop_exit
      _
    %1048 = vsyncpa [#allocation3], 1
    %s1049 = scalar_lea.sflag [#allocation3], 1
    %1050 = vsyncpa %s1049, 1
    %1051 = vsyncpa [#allocation6], 1
    %1052 = vsyncpa [#allocation4], 1
    %s1053 = scalar_lea.sflag [#allocation4], 1
    %1054 = vsyncpa %s1053, 1

</llo_original>
